<compile_context>
chip_gen: v7x
topology: tpu7x:2x2x1
jax: 0.10.0
libtpu: 0.0.40
codegen_flags: <defaults>
</compile_context>

<pallas_src>
import jax
import jax.numpy as jnp
from jax.experimental import pallas as pl
from jax.experimental.pallas import tpu as pltpu


def _mlp_kernel(x_ref, w1_ref, b1_ref, w2_ref, b2_ref, w3_ref, b3_ref, o_ref):
    # Widen bf16 input tile to f32 in VMEM (keeps all math f32; HBM traffic stays bf16).
    x = x_ref[...].astype(jnp.float32)

    # Layer 1: (TB,140) @ (140,32) + (1,32) -> sigmoid
    h1 = jnp.dot(x, w1_ref[...], preferred_element_type=jnp.float32)
    h1 = jax.nn.sigmoid(h1 + b1_ref[...])

    # Layer 2: (TB,32) @ (32,32) + (1,32) -> sigmoid
    h2 = jnp.dot(h1, w2_ref[...], preferred_element_type=jnp.float32)
    h2 = jax.nn.sigmoid(h2 + b2_ref[...])

    # Last: (TB,32) @ (32,1) + (1,1) -> sigmoid
    h3 = jnp.dot(h2, w3_ref[...], preferred_element_type=jnp.float32)
    o_ref[...] = jax.nn.sigmoid(h3 + b3_ref[...]).astype(o_ref.dtype)


def net_forward(x, params, *, block_rows=2048):
    """x: (B, 140) float32. Returns (B,) float32 (matches x.view(-1))."""
    w1, b1, w2, b2, w3, b3 = params
    B, D = x.shape

    # Halve HBM input traffic (the dominant term: ~280 B/row vs 4 B/row output).
    x_bf16 = x.astype(jnp.bfloat16)

    # Batch tile: multiple of 8 (sublane rule), clamped so tiny batches still work.
    TB = min(block_rows, max(8, ((B + 7) // 8) * 8))
    B_pad = pl.cdiv(B, TB) * TB
    if B_pad != B:
        # Zero-pad the tail tile; padded rows are sliced off after the call.
        x_bf16 = jnp.pad(x_bf16, ((0, B_pad - B), (0, 0)))

    # Weights/biases: constant index map -> loaded once, stay resident in VMEM.
    resident = lambda shape: pl.BlockSpec(shape, lambda i: (0,) * len(shape))

    out = pl.pallas_call(
        _mlp_kernel,
        out_shape=jax.ShapeDtypeStruct((B_pad, 1), jnp.float32),
        grid=(B_pad // TB,),
        in_specs=[
            pl.BlockSpec((TB, D), lambda i: (i, 0)),   # batch-tiled input
            resident(w1.shape), resident(b1.shape),
            resident(w2.shape), resident(b2.shape),
            resident(w3.shape), resident(b3.shape),
        ],
        out_specs=pl.BlockSpec((TB, 1), lambda i: (i, 0)),
        compiler_params=pltpu.CompilerParams(
            dimension_semantics=("parallel",)),        # v7x: shard batch over both TCs
    )(x_bf16, w1, b1, w2, b2, w3, b3)

    return out[:B].reshape(-1)


def init_params(key):
    """Deterministic init mimicking nn.Linear's uniform(-1/sqrt(in), 1/sqrt(in)).
    Weights are stored as (in_features, out_features)."""
    def linear(key, fan_in, fan_out):
        kw, kb = jax.random.split(key)
        bound = 1.0 / jnp.sqrt(fan_in)
        w = jax.random.uniform(kw, (fan_in, fan_out), jnp.float32, -bound, bound)
        b = jax.random.uniform(kb, (1, fan_out), jnp.float32, -bound, bound)
        return w, b

    k1, k2, k3 = jax.random.split(key, 3)
    w1, b1 = linear(k1, 140, 32)
    w2, b2 = linear(k2, 32, 32)
    w3, b3 = linear(k3, 32, 1)
    return (w1, b1, w2, b2, w3, b3)


if __name__ == "__main__":
    key = jax.random.PRNGKey(0)
    kx, kp = jax.random.split(key)

    B = 8  # small batch for the smoke test (production batches tile at TB<=2048)
    x = jax.random.normal(kx, (B, 140), dtype=jnp.float32)
    params = init_params(kp)

    y = net_forward(x, params)
    jax.block_until_ready(y)

    # Reference check against plain JAX (f32 path); bf16 input quantization
    # warrants a looser tolerance.
    w1, b1, w2, b2, w3, b3 = params
    h = jax.nn.sigmoid(x @ w1 + b1)
    h = jax.nn.sigmoid(h @ w2 + b2)
    y_ref = jax.nn.sigmoid(h @ w3 + b3).reshape(-1)
    assert y.shape == (B,)
    assert jnp.allclose(y, y_ref, atol=2e-2), (y, y_ref)

    print("KERNEL_OK")
</pallas_src>

<mosaic_0001>
module attributes {stable_mosaic.version = 11 : i64} {
  func.func @_mlp_kernel(%arg0: i32, %arg1: memref<8x140xbf16, #tpu.memory_space<vmem>>, %arg2: memref<140x32xf32, #tpu.memory_space<vmem>>, %arg3: memref<1x32xf32, #tpu.memory_space<vmem>>, %arg4: memref<32x32xf32, #tpu.memory_space<vmem>>, %arg5: memref<1x32xf32, #tpu.memory_space<vmem>>, %arg6: memref<32x1xf32, #tpu.memory_space<vmem>>, %arg7: memref<1x1xf32, #tpu.memory_space<vmem>>, %arg8: memref<8x1xf32, #tpu.memory_space<vmem>>) attributes {dimension_semantics = [#tpu.dimension_semantics<parallel>], iteration_bounds = array<i64: 1>, scalar_prefetch = 0 : i64, scratch_operands = 0 : i64, tpu.core_type = #tpu.core_type<tc>, window_params = [{transform_indices = @transform_0, window_bounds = array<i64: 8, 140>}, {pipeline_mode = #tpu.pipeline_mode<synchronous>, transform_indices = @transform_1, window_bounds = array<i64: 140, 32>}, {pipeline_mode = #tpu.pipeline_mode<synchronous>, transform_indices = @transform_2, window_bounds = array<i64: 1, 32>}, {pipeline_mode = #tpu.pipeline_mode<synchronous>, transform_indices = @transform_3, window_bounds = array<i64: 32, 32>}, {pipeline_mode = #tpu.pipeline_mode<synchronous>, transform_indices = @transform_4, window_bounds = array<i64: 1, 32>}, {pipeline_mode = #tpu.pipeline_mode<synchronous>, transform_indices = @transform_5, window_bounds = array<i64: 32, 1>}, {pipeline_mode = #tpu.pipeline_mode<synchronous>, transform_indices = @transform_6, window_bounds = array<i64: 1, 1>}, {transform_indices = @transform_7, window_bounds = array<i64: 8, 1>}]} {
    %c0 = arith.constant 0 : index
    %c0_0 = arith.constant 0 : index
    %0 = vector.load %arg1[%c0, %c0_0] : memref<8x140xbf16, #tpu.memory_space<vmem>>, vector<8x140xbf16>
    %1 = arith.extf %0 : vector<8x140xbf16> to vector<8x140xf32>
    %c0_1 = arith.constant 0 : index
    %c0_2 = arith.constant 0 : index
    %2 = vector.load %arg2[%c0_1, %c0_2] : memref<140x32xf32, #tpu.memory_space<vmem>>, vector<140x32xf32>
    %cst = arith.constant dense<0.000000e+00> : vector<8x32xf32>
    %3 = tpu.matmul %1, %2, %cst {dimension_numbers = #tpu.dot_dimension_numbers<[1], [0], [0], [1], [0, 0, 1, 1], [], []>} : vector<8x140xf32>, vector<140x32xf32>, vector<8x32xf32> -> vector<8x32xf32>
    %c0_3 = arith.constant 0 : index
    %c0_4 = arith.constant 0 : index
    %4 = vector.load %arg3[%c0_3, %c0_4] : memref<1x32xf32, #tpu.memory_space<vmem>>, vector<1x32xf32>
    %5 = vector.broadcast %4 : vector<1x32xf32> to vector<8x32xf32>
    %6 = arith.addf %3, %5 : vector<8x32xf32>
    %7 = arith.negf %6 : vector<8x32xf32>
    %8 = math.exp %7 : vector<8x32xf32>
    %cst_5 = arith.constant 1.000000e+00 : f32
    %9 = vector.broadcast %cst_5 : f32 to vector<8x32xf32>
    %10 = arith.addf %9, %8 : vector<8x32xf32>
    %11 = arith.divf %9, %10 : vector<8x32xf32>
    %c0_6 = arith.constant 0 : index
    %c0_7 = arith.constant 0 : index
    %12 = vector.load %arg4[%c0_6, %c0_7] : memref<32x32xf32, #tpu.memory_space<vmem>>, vector<32x32xf32>
    %cst_8 = arith.constant dense<0.000000e+00> : vector<8x32xf32>
    %13 = tpu.matmul %11, %12, %cst_8 {dimension_numbers = #tpu.dot_dimension_numbers<[1], [0], [0], [1], [0, 0, 1, 1], [], []>} : vector<8x32xf32>, vector<32x32xf32>, vector<8x32xf32> -> vector<8x32xf32>
    %c0_9 = arith.constant 0 : index
    %c0_10 = arith.constant 0 : index
    %14 = vector.load %arg5[%c0_9, %c0_10] : memref<1x32xf32, #tpu.memory_space<vmem>>, vector<1x32xf32>
    %15 = vector.broadcast %14 : vector<1x32xf32> to vector<8x32xf32>
    %16 = arith.addf %13, %15 : vector<8x32xf32>
    %17 = arith.negf %16 : vector<8x32xf32>
    %18 = math.exp %17 : vector<8x32xf32>
    %cst_11 = arith.constant 1.000000e+00 : f32
    %19 = vector.broadcast %cst_11 : f32 to vector<8x32xf32>
    %20 = arith.addf %19, %18 : vector<8x32xf32>
    %21 = arith.divf %19, %20 : vector<8x32xf32>
    %c0_12 = arith.constant 0 : index
    %c0_13 = arith.constant 0 : index
    %22 = vector.load %arg6[%c0_12, %c0_13] : memref<32x1xf32, #tpu.memory_space<vmem>>, vector<32x1xf32>
    %cst_14 = arith.constant dense<0.000000e+00> : vector<8x1xf32>
    %23 = tpu.matmul %21, %22, %cst_14 {dimension_numbers = #tpu.dot_dimension_numbers<[1], [0], [0], [1], [0, 0, 1, 1], [], []>} : vector<8x32xf32>, vector<32x1xf32>, vector<8x1xf32> -> vector<8x1xf32>
    %c0_15 = arith.constant 0 : index
    %c0_16 = arith.constant 0 : index
    %24 = vector.load %arg7[%c0_15, %c0_16] : memref<1x1xf32, #tpu.memory_space<vmem>>, vector<1x1xf32>
    %25 = vector.broadcast %24 : vector<1x1xf32> to vector<8x1xf32>
    %26 = arith.addf %23, %25 : vector<8x1xf32>
    %27 = arith.negf %26 : vector<8x1xf32>
    %28 = math.exp %27 : vector<8x1xf32>
    %cst_17 = arith.constant 1.000000e+00 : f32
    %29 = vector.broadcast %cst_17 : f32 to vector<8x1xf32>
    %30 = arith.addf %29, %28 : vector<8x1xf32>
    %31 = arith.divf %29, %30 : vector<8x1xf32>
    %c0_18 = arith.constant 0 : index
    %c0_19 = arith.constant 0 : index
    %32 = vector.load %arg8[%c0_18, %c0_19] : memref<8x1xf32, #tpu.memory_space<vmem>>, vector<8x1xf32>
    tpu.vector_store %arg8[%c0_18, %c0_19], %31 {strides = array<i32>} : memref<8x1xf32, #tpu.memory_space<vmem>>, vector<8x1xf32>,
    return
  }
  func.func @transform_0(%arg0: i32) -> (i32, i32) {
    %c0_i32 = arith.constant 0 : i32
    %c0_i32_0 = arith.constant 0 : i32
    return %arg0, %c0_i32 : i32, i32
  }
  func.func @transform_1(%arg0: i32) -> (i32, i32) {
    %c0_i32 = arith.constant 0 : i32
    %c0_i32_0 = arith.constant 0 : i32
    %c0_i32_1 = arith.constant 0 : i32
    return %c0_i32, %c0_i32_0 : i32, i32
  }
  func.func @transform_2(%arg0: i32) -> (i32, i32) {
    %c0_i32 = arith.constant 0 : i32
    %c0_i32_0 = arith.constant 0 : i32
    %c0_i32_1 = arith.constant 0 : i32
    return %c0_i32, %c0_i32_0 : i32, i32
  }
  func.func @transform_3(%arg0: i32) -> (i32, i32) {
    %c0_i32 = arith.constant 0 : i32
    %c0_i32_0 = arith.constant 0 : i32
    %c0_i32_1 = arith.constant 0 : i32
    return %c0_i32, %c0_i32_0 : i32, i32
  }
  func.func @transform_4(%arg0: i32) -> (i32, i32) {
    %c0_i32 = arith.constant 0 : i32
    %c0_i32_0 = arith.constant 0 : i32
    %c0_i32_1 = arith.constant 0 : i32
    return %c0_i32, %c0_i32_0 : i32, i32
  }
  func.func @transform_5(%arg0: i32) -> (i32, i32) {
    %c0_i32 = arith.constant 0 : i32
    %c0_i32_0 = arith.constant 0 : i32
    %c0_i32_1 = arith.constant 0 : i32
    return %c0_i32, %c0_i32_0 : i32, i32
  }
  func.func @transform_6(%arg0: i32) -> (i32, i32) {
    %c0_i32 = arith.constant 0 : i32
    %c0_i32_0 = arith.constant 0 : i32
    %c0_i32_1 = arith.constant 0 : i32
    return %c0_i32, %c0_i32_0 : i32, i32
  }
  func.func @transform_7(%arg0: i32) -> (i32, i32) {
    %c0_i32 = arith.constant 0 : i32
    %c0_i32_0 = arith.constant 0 : i32
    return %arg0, %c0_i32 : i32, i32
  }
}

</mosaic_0001>

<llo_original>
// kernel: tpu_custom_call.1
$region0: #{tpu_custom_call.1}
  #allocation0 [shape = 'u32[]', space=smem, size = 0x4, offset = 0x4, fixed_abs, tag = 'smem constant byte address 0x4 - core index']
  #allocation1 [shape = 'u32[144,128]{1,0:T(1,128)}', space=vmem, size = 0x12000, scoped, tag = 'internal scratch']
  #allocation2 [shape = 'f32[1,1]{1,0:T(1,128)S(1)}', space=vmem, size = 0x200, scoped, tag = 'scoped memory for tpu_custom_call.1']
  %s0 = inlined_call_operand.vmem [shape: bf16[8,140], index: 0, kind: input, shape index: {}]
  %s1 = inlined_call_operand.vmem [shape: f32[140,32], index: 1, kind: input, shape index: {}]
  %s2 = inlined_call_operand.vmem [shape: f32[1,32], index: 2, kind: input, shape index: {}]
  %s3 = inlined_call_operand.vmem [shape: f32[32,32], index: 3, kind: input, shape index: {}]
  %s4 = inlined_call_operand.vmem [shape: f32[1,32], index: 4, kind: input, shape index: {}]
  %s5 = inlined_call_operand.vmem [shape: f32[32,1], index: 5, kind: input, shape index: {}]
  %s6 = inlined_call_operand.<no memory space> [shape: f32[1,1], index: 6, kind: input, shape index: {}]
  %s7 = inlined_call_operand.vmem [shape: f32[8,1], index: 7, kind: output, shape index: {}]
  %s8 = sld [smem:[#allocation0]]
  $region38: #{tpu_custom_call.1} parent=0
    _
  %s10 = ssub.s32 1, %s8
  %s11 = scalar_select 0, %s10, %s8
  %v12 = vstv %s6
  %13 = vst [vmem:[#allocation2] sm:$0x1] %v12
  // Predicated region
  $region2: #{tpu_custom_call.1} parent=0 // pred_check
    _
  $region3: #{tpu_custom_call.1} parent=0 // pred_check_branch
    %15 = sbr.rel (0) target = $region5
  $region4: #{tpu_custom_call.1} parent=0 // pred_region
    _
  $region5: #{tpu_custom_call.1} parent=0 // pred_fallthru
    _
  // Predicated region
  $region6: #{tpu_custom_call.1} parent=0 // pred_check
    _
  $region7: #{tpu_custom_call.1} parent=0 // pred_check_branch
    %17 = sbr.rel (0) target = $region9
  $region8: #{tpu_custom_call.1} parent=0 // pred_region
    _
  $region9: #{tpu_custom_call.1} parent=0 // pred_fallthru
    _
  // Predicated region
  $region10: #{tpu_custom_call.1} parent=0 // pred_check
    _
  $region11: #{tpu_custom_call.1} parent=0 // pred_check_branch
    %19 = sbr.rel (0) target = $region13
  $region12: #{tpu_custom_call.1} parent=0 // pred_region
    _
  $region13: #{tpu_custom_call.1} parent=0 // pred_fallthru
    _
  // Predicated region
  $region14: #{tpu_custom_call.1} parent=0 // pred_check
    _
  $region15: #{tpu_custom_call.1} parent=0 // pred_check_branch
    %21 = sbr.rel (0) target = $region17
  $region16: #{tpu_custom_call.1} parent=0 // pred_region
    _
  $region17: #{tpu_custom_call.1} parent=0 // pred_fallthru
    _
  // Predicated region
  $region18: #{tpu_custom_call.1} parent=0 // pred_check
    _
  $region19: #{tpu_custom_call.1} parent=0 // pred_check_branch
    %23 = sbr.rel (0) target = $region21
  $region20: #{tpu_custom_call.1} parent=0 // pred_region
    _
  $region21: #{tpu_custom_call.1} parent=0 // pred_fallthru
    _
  // Predicated region
  $region22: #{tpu_custom_call.1} parent=0 // pred_check
    _
  $region23: #{tpu_custom_call.1} parent=0 // pred_check_branch
    %25 = sbr.rel (0) target = $region25
  $region24: #{tpu_custom_call.1} parent=0 // pred_region
    _
  $region25: #{tpu_custom_call.1} parent=0 // pred_fallthru
    _
  // Predicated region
  $region26: #{tpu_custom_call.1} parent=0 // pred_check
    _
  $region27: #{tpu_custom_call.1} parent=0 // pred_check_branch
    %27 = sbr.rel (0) target = $region29
  $region28: #{tpu_custom_call.1} parent=0 // pred_region
    _
  $region29: #{tpu_custom_call.1} parent=0 // pred_fallthru
    _
  %v28 = vld [vmem:[%s0] sm:$0xff]
  %v29 = vunpack.c.l.bf16 %v28
  %v30 = vunpack.c.h.bf16 %v28
  %v31 = vld [vmem:[%s1] sm:$0xff]
  %v32 = vld [vmem:[%s1 + $0x8] sm:$0xff]
  %v33 = vld [vmem:[%s1 + $0x10] sm:$0xff]
  %v34 = vld [vmem:[%s1 + $0x18] sm:$0xff]
  %v35 = vld [vmem:[%s1 + $0x20] sm:$0xff]
  %v36 = vld [vmem:[%s1 + $0x28] sm:$0xff]
  %v37 = vld [vmem:[%s1 + $0x30] sm:$0xff]
  %v38 = vld [vmem:[%s1 + $0x38] sm:$0xff]
  %v39 = vld [vmem:[%s1 + $0x40] sm:$0xff]
  %v40 = vld [vmem:[%s1 + $0x48] sm:$0xff]
  %v41 = vld [vmem:[%s1 + $0x50] sm:$0xff]
  %v42 = vld [vmem:[%s1 + $0x58] sm:$0xff]
  %v43 = vld [vmem:[%s1 + $0x60] sm:$0xff]
  %v44 = vld [vmem:[%s1 + $0x68] sm:$0xff]
  %v45 = vld [vmem:[%s1 + $0x70] sm:$0xff]
  %v46 = vld [vmem:[%s1 + $0x78] sm:$0xff]
  %v47 = vld [vmem:[%s1 + $0x80] sm:$0xff]
  %v48 = vld [vmem:[%s1 + $0x88] sm:$0xf]
  %v49 = vld [vmem:[%s2] sm:$0x1]
  %v51 = vlaneseq
  %v52 = vshrl.u32 %v51, 7
  %v53 = vsub.s32 0, %v52
  %v54 = vrot.slane %v49, %v53
  %vm56 = vcmask 97280
  %v58 = vsel %vm56, %v30, 0
  %vm60 = vcmask 1043456
  %v62 = vsel %vm60, %v48, 0
  %64 = vmatprep.subr.mxu0 0.0
  %65 = vmatpush1.msra.mxu0 %v31
  %66 = vmatprep.subr.mxu0 0.0
  %67 = vmatpush1.msra.mxu0 %v32
  %68 = vmatprep.subr.mxu0 0.0
  %69 = vmatpush1.msra.mxu0 %v33
  %70 = vmatprep.subr.mxu0 0.0
  %71 = vmatpush1.msra.mxu0 %v34
  %72 = vmatprep.subr.mxu0 0.0
  %73 = vmatpush1.msra.mxu0 %v35
  %74 = vmatprep.subr.mxu0 0.0
  %75 = vmatpush1.msra.mxu0 %v36
  %76 = vmatprep.subr.mxu0 0.0
  %77 = vmatpush1.msra.mxu0 %v37
  %78 = vmatprep.subr.mxu0 0.0
  %79 = vmatpush1.msra.mxu0 %v38
  %80 = vmatprep.subr.mxu0 0.0
  %81 = vmatpush1.msra.mxu0 %v39
  %82 = vmatprep.subr.mxu0 0.0
  %83 = vmatpush1.msra.mxu0 %v40
  %84 = vmatprep.subr.mxu0 0.0
  %85 = vmatpush1.msra.mxu0 %v41
  %86 = vmatprep.subr.mxu0 0.0
  %87 = vmatpush1.msra.mxu0 %v42
  %88 = vmatprep.subr.mxu0 0.0
  %89 = vmatpush1.msra.mxu0 %v43
  %90 = vmatprep.subr.mxu0 0.0
  %91 = vmatpush1.msra.mxu0 %v44
  %92 = vmatprep.subr.mxu0 0.0
  %93 = vmatpush1.msra.mxu0 %v45
  %94 = vmatprep.subr.mxu0 0.0
  %95 = vmatpush1.msra.mxu0 %v46
  %96 = vmatprep.subr.mxu0 0.0
  %97 = vmatpush1.msra.mxu0 %v47
  %98 = vmatprep.subr.mxu0 0.0
  %99 = vmatpush1.msra.mxu0 %v62
  %100 = vmatprep.subr.mxu0 0.0
  %101 = vmatpush1.msra.mxu0 0.0
  %102 = vmatprep.subr.mxu0 0.0
  %103 = vmatpush1.msra.mxu0 0.0
  %104 = vmatprep.subr.mxu0 0.0
  %105 = vmatpush1.msra.mxu0 0.0
  %106 = vmatprep.subr.mxu0 0.0
  %107 = vmatpush1.msra.mxu0 0.0
  %108 = vmatprep.subr.mxu0 0.0
  %109 = vmatpush1.msra.mxu0 0.0
  %110 = vmatprep.subr.mxu0 0.0
  %111 = vmatpush1.msra.mxu0 0.0
  %112 = vmatprep.subr.mxu0 0.0
  %113 = vmatpush1.msra.mxu0 0.0
  %114 = vmatprep.subr.mxu0 0.0
  %115 = vmatpush1.msra.mxu0 0.0
  %116 = vmatprep.subr.mxu0 0.0
  %117 = vmatpush1.msra.mxu0 0.0
  %118 = vmatprep.subr.mxu0 0.0
  %119 = vmatpush1.msra.mxu0 0.0
  %120 = vmatprep.subr.mxu0 0.0
  %121 = vmatpush1.msra.mxu0 0.0
  %122 = vmatprep.subr.mxu0 0.0
  %123 = vmatpush1.msra.mxu0 0.0
  %124 = vmatprep.subr.mxu0 0.0
  %125 = vmatpush1.msra.mxu0 0.0
  %126 = vmatprep.subr.mxu0 0.0
  %127 = vmatpush1.msra.mxu0 0.0
  %128 = vmatprep.mubr.f32.mxu0 %v58
  %129 = vmatmul.mubr.f32.gmra.mrb[0].mxu0 %v29
  %v130 = vpop.f32.mrb[0].mxu0
  %v131 = vadd.f32 %v54, %v130
  %v132 = vpop.f32.mrb[0].mxu0
  %133 = vdwg.mxu0
  %v134 = vxor.u32 %v131, 2147483648
  %v135 = vmul.f32 %v134, 1.442695
  %v136 = vpow.pop %v135
  %v137 = vadd.f32 %v136, 1.0
  %v138 = vrcp.pop %v137
  %v139 = vmul.f32 1.0, %v138
  %v140 = vld [vmem:[%s3] sm:$0xff]
  %v141 = vld [vmem:[%s3 + $0x8] sm:$0xff]
  %v142 = vld [vmem:[%s3 + $0x10] sm:$0xff]
  %v143 = vld [vmem:[%s3 + $0x18] sm:$0xff]
  %v144 = vld [vmem:[%s4] sm:$0x1]
  %v146 = vlaneseq
  %v147 = vshrl.u32 %v146, 7
  %v148 = vsub.s32 0, %v147
  %v149 = vrot.slane %v144, %v148
  %vm151 = vcmask 261120
  %v153 = vsel %vm151, %v139, 0
  %155 = vmatprep.subr.mxu0 0.0
  %156 = vmatpush1.msra.mxu0 %v140
  %157 = vmatprep.subr.mxu0 0.0
  %158 = vmatpush1.msra.mxu0 %v141
  %159 = vmatprep.subr.mxu0 0.0
  %160 = vmatpush1.msra.mxu0 %v142
  %161 = vmatprep.subr.mxu0 0.0
  %162 = vmatpush1.msra.mxu0 %v143
  %163 = vmatprep.subr.mxu0 0.0
  %164 = vmatpush1.msra.mxu0 0.0
  %165 = vmatprep.subr.mxu0 0.0
  %166 = vmatpush1.msra.mxu0 0.0
  %167 = vmatprep.subr.mxu0 0.0
  %168 = vmatpush1.msra.mxu0 0.0
  %169 = vmatprep.subr.mxu0 0.0
  %170 = vmatpush1.msra.mxu0 0.0
  %171 = vmatprep.subr.mxu0 0.0
  %172 = vmatpush1.msra.mxu0 0.0
  %173 = vmatprep.subr.mxu0 0.0
  %174 = vmatpush1.msra.mxu0 0.0
  %175 = vmatprep.subr.mxu0 0.0
  %176 = vmatpush1.msra.mxu0 0.0
  %177 = vmatprep.subr.mxu0 0.0
  %178 = vmatpush1.msra.mxu0 0.0
  %179 = vmatprep.subr.mxu0 0.0
  %180 = vmatpush1.msra.mxu0 0.0
  %181 = vmatprep.subr.mxu0 0.0
  %182 = vmatpush1.msra.mxu0 0.0
  %183 = vmatprep.subr.mxu0 0.0
  %184 = vmatpush1.msra.mxu0 0.0
  %185 = vmatprep.subr.mxu0 0.0
  %186 = vmatpush1.msra.mxu0 0.0
  %187 = vmatprep.subr.mxu0 0.0
  %188 = vmatpush1.msra.mxu0 0.0
  %189 = vmatprep.subr.mxu0 0.0
  %190 = vmatpush1.msra.mxu0 0.0
  %191 = vmatprep.subr.mxu0 0.0
  %192 = vmatpush1.msra.mxu0 0.0
  %193 = vmatprep.subr.mxu0 0.0
  %194 = vmatpush1.msra.mxu0 0.0
  %195 = vmatprep.subr.mxu0 0.0
  %196 = vmatpush1.msra.mxu0 0.0
  %197 = vmatprep.subr.mxu0 0.0
  %198 = vmatpush1.msra.mxu0 0.0
  %199 = vmatprep.subr.mxu0 0.0
  %200 = vmatpush1.msra.mxu0 0.0
  %201 = vmatprep.subr.mxu0 0.0
  %202 = vmatpush1.msra.mxu0 0.0
  %203 = vmatprep.subr.mxu0 0.0
  %204 = vmatpush1.msra.mxu0 0.0
  %205 = vmatprep.subr.mxu0 0.0
  %206 = vmatpush1.msra.mxu0 0.0
  %207 = vmatprep.subr.mxu0 0.0
  %208 = vmatpush1.msra.mxu0 0.0
  %209 = vmatprep.subr.mxu0 0.0
  %210 = vmatpush1.msra.mxu0 0.0
  %211 = vmatprep.subr.mxu0 0.0
  %212 = vmatpush1.msra.mxu0 0.0
  %213 = vmatprep.subr.mxu0 0.0
  %214 = vmatpush1.msra.mxu0 0.0
  %215 = vmatprep.subr.mxu0 0.0
  %216 = vmatpush1.msra.mxu0 0.0
  %217 = vmatprep.subr.mxu0 0.0
  %218 = vmatpush1.msra.mxu0 0.0
  %219 = vmatprep.mubr.f32.mxu0 0.0
  %220 = vmatmul.mubr.f32.gmra.mrb[0].mxu0 %v153
  %v221 = vpop.f32.mrb[0].mxu0
  %v222 = vadd.f32 %v149, %v221
  %v223 = vpop.f32.mrb[0].mxu0
  %224 = vdwg.mxu0
  %v225 = vxor.u32 %v222, 2147483648
  %v226 = vmul.f32 %v225, 1.442695
  %v227 = vpow.pop %v226
  %v228 = vadd.f32 %v227, 1.0
  %v229 = vrcp.pop %v228
  %v230 = vmul.f32 1.0, %v229
  %v231 = vld [vmem:[%s5] sm:$0xff]
  %v232 = vld [vmem:[%s5 + $0x8] sm:$0xff]
  %v233 = vld [vmem:[%s5 + $0x10] sm:$0xff]
  %v234 = vld [vmem:[%s5 + $0x18] sm:$0xff]
  %v235 = vld [vmem:[#allocation2] sm:$0x1]
  %v237 = vlaneseq
  %v238 = vshrl.u32 %v237, 7
  %v239 = vsub.s32 0, %v238
  %v240 = vrot.slane %v235, %v239
  %v243 = vsel %vm151, %v230, 0
  %245 = vmatprep.subr.mxu0 0.0
  %246 = vmatpush1.msra.mxu0 %v231
  %247 = vmatprep.subr.mxu0 0.0
  %248 = vmatpush1.msra.mxu0 %v232
  %249 = vmatprep.subr.mxu0 0.0
  %250 = vmatpush1.msra.mxu0 %v233
  %251 = vmatprep.subr.mxu0 0.0
  %252 = vmatpush1.msra.mxu0 %v234
  %253 = vmatprep.subr.mxu0 0.0
  %254 = vmatpush1.msra.mxu0 0.0
  %255 = vmatprep.subr.mxu0 0.0
  %256 = vmatpush1.msra.mxu0 0.0
  %257 = vmatprep.subr.mxu0 0.0
  %258 = vmatpush1.msra.mxu0 0.0
  %259 = vmatprep.subr.mxu0 0.0
  %260 = vmatpush1.msra.mxu0 0.0
  %261 = vmatprep.subr.mxu0 0.0
  %262 = vmatpush1.msra.mxu0 0.0
  %263 = vmatprep.subr.mxu0 0.0
  %264 = vmatpush1.msra.mxu0 0.0
  %265 = vmatprep.subr.mxu0 0.0
  %266 = vmatpush1.msra.mxu0 0.0
  %267 = vmatprep.subr.mxu0 0.0
  %268 = vmatpush1.msra.mxu0 0.0
  %269 = vmatprep.subr.mxu0 0.0
  %270 = vmatpush1.msra.mxu0 0.0
  %271 = vmatprep.subr.mxu0 0.0
  %272 = vmatpush1.msra.mxu0 0.0
  %273 = vmatprep.subr.mxu0 0.0
  %274 = vmatpush1.msra.mxu0 0.0
  %275 = vmatprep.subr.mxu0 0.0
  %276 = vmatpush1.msra.mxu0 0.0
  %277 = vmatprep.subr.mxu0 0.0
  %278 = vmatpush1.msra.mxu0 0.0
  %279 = vmatprep.subr.mxu0 0.0
  %280 = vmatpush1.msra.mxu0 0.0
  %281 = vmatprep.subr.mxu0 0.0
  %282 = vmatpush1.msra.mxu0 0.0
  %283 = vmatprep.subr.mxu0 0.0
  %284 = vmatpush1.msra.mxu0 0.0
  %285 = vmatprep.subr.mxu0 0.0
  %286 = vmatpush1.msra.mxu0 0.0
  %287 = vmatprep.subr.mxu0 0.0
  %288 = vmatpush1.msra.mxu0 0.0
  %289 = vmatprep.subr.mxu0 0.0
  %290 = vmatpush1.msra.mxu0 0.0
  %291 = vmatprep.subr.mxu0 0.0
  %292 = vmatpush1.msra.mxu0 0.0
  %293 = vmatprep.subr.mxu0 0.0
  %294 = vmatpush1.msra.mxu0 0.0
  %295 = vmatprep.subr.mxu0 0.0
  %296 = vmatpush1.msra.mxu0 0.0
  %297 = vmatprep.subr.mxu0 0.0
  %298 = vmatpush1.msra.mxu0 0.0
  %299 = vmatprep.subr.mxu0 0.0
  %300 = vmatpush1.msra.mxu0 0.0
  %301 = vmatprep.subr.mxu0 0.0
  %302 = vmatpush1.msra.mxu0 0.0
  %303 = vmatprep.subr.mxu0 0.0
  %304 = vmatpush1.msra.mxu0 0.0
  %305 = vmatprep.subr.mxu0 0.0
  %306 = vmatpush1.msra.mxu0 0.0
  %307 = vmatprep.subr.mxu0 0.0
  %308 = vmatpush1.msra.mxu0 0.0
  %309 = vmatprep.mubr.f32.mxu0 0.0
  %310 = vmatmul.mubr.f32.gmra.mrb[0].mxu0 %v243
  %v311 = vpop.f32.mrb[0].mxu0
  %v312 = vadd.f32 %v240, %v311
  %v313 = vpop.f32.mrb[0].mxu0
  %314 = vdwg.mxu0
  %v315 = vxor.u32 %v312, 2147483648
  %v316 = vmul.f32 %v315, 1.442695
  %v317 = vpow.pop %v316
  %v318 = vadd.f32 %v317, 1.0
  %v319 = vrcp.pop %v318
  %v320 = vmul.f32 1.0, %v319
  %vm321 = vcmask 7168
  %322 = vst.msk [vmem:[%s7] sm:$0xff] %vm321, %v320
  // Predicated region
  $region30: #{tpu_custom_call.1} parent=0 // pred_check
    _
  $region31: #{tpu_custom_call.1} parent=0 // pred_check_branch
    %324 = sbr.rel (0) target = $region33
  $region32: #{tpu_custom_call.1} parent=0 // pred_region
    _
  $region33: #{tpu_custom_call.1} parent=0 // pred_fallthru
    _
  // Predicated region
  $region34: #{tpu_custom_call.1} parent=0 // pred_check
    _
  $region35: #{tpu_custom_call.1} parent=0 // pred_check_branch
    %326 = sbr.rel (0) target = $region37
  $region36: #{tpu_custom_call.1} parent=0 // pred_region
    _
  $region37: #{tpu_custom_call.1} parent=0 // pred_fallthru
    _

</llo_original>
